<compile_context>
chip_gen: v6e
topology: v6e:2x2x1
jax: 0.10.0
libtpu: 0.0.40
codegen_flags: <defaults>
</compile_context>

<pallas_src>
import functools

import jax
import jax.numpy as jnp
from jax.experimental import pallas as pl
from jax.experimental.pallas import tpu as pltpu


def _round_up(v, m):
    return ((v + m - 1) // m) * m


def _choose_row_tile(n):
    """Row-tile size for streaming L from HBM, plus the padded node count."""
    n8 = _round_up(max(n, 8), 8)
    rt = min(256, n8)           # 256 rows/tile once the graph is big enough
    np_ = _round_up(n8, rt)
    return rt, np_


# ----------------------------- Pallas kernel --------------------------------

def _kipfnet_kernel(l_hbm, x_ref, w1_ref, b1_ref, w2_ref, b2_ref, o_ref,
                    l_vmem, basis_ref, t1f_ref, sem,
                    *, K1, K2, F, CP, RT, n_tiles):
    cdt = x_ref.dtype

    def l_copy(i, slot):
        return pltpu.make_async_copy(
            l_hbm.at[pl.ds(i * RT, RT), :],
            l_vmem.at[pl.ds(i * RT, RT), :],
            sem.at[slot])

    # Kick off the first L row-tile DMA before any compute.
    l_copy(0, 0).start()

    x = x_ref[...]                       # [NP, F] compute dtype
    basis_ref[:, 0:F] = x                # T_0(L) x = x

    # ---- t1 = L @ x, row tile by row tile: the remaining L DMA overlaps with
    # ---- the MXU work of the first Chebyshev order.
    for i in range(n_tiles):
        l_copy(i, i & 1).wait()
        if i + 1 < n_tiles:
            l_copy(i + 1, (i + 1) & 1).start()
        if K1 > 1:
            rows = jnp.dot(l_vmem[i * RT:(i + 1) * RT, :], x,
                           preferred_element_type=jnp.float32)
            t1f_ref[i * RT:(i + 1) * RT, :] = rows               # f32 carry
            basis_ref[i * RT:(i + 1) * RT, F:2 * F] = rows.astype(cdt)

    # ---- Chebyshev recurrence, orders 2..K1-1.  Carries stay in f32; only the
    # ---- MXU operand is cast, so bf16 rounding does not compound.
    if K1 > 2:
        t0f = x.astype(jnp.float32)
        t1f = t1f_ref[...]
        for k in range(2, K1):
            t2f = (2.0 * jnp.dot(l_vmem[...], t1f.astype(cdt),
                                 preferred_element_type=jnp.float32) - t0f)
            basis_ref[:, k * F:(k + 1) * F] = t2f.astype(cdt)
            t0f, t1f = t1f, t2f

    # ---- Kipfblock1: ONE stacked matmul over all K1 orders, then ReLU.
    h = (jnp.dot(basis_ref[...], w1_ref[...],
                 preferred_element_type=jnp.float32) + b1_ref[...])
    h = jnp.maximum(h, 0.0)
    # TODO(synk): F.dropout(p=0.5) is identity in eval mode; training-time
    # stochastic dropout intentionally not implemented.
    hb = h.astype(cdt)

    # ---- conv_mix: ChebConv(H -> C, K=K2), stacked matmul + associativity so
    # ---- the N x N matmul runs at width CP instead of the hidden width.
    z = jnp.dot(hb, w2_ref[...], preferred_element_type=jnp.float32)  # [NP, K2*CP]
    out = z[:, 0:CP]
    if K2 > 1:
        out = out + jnp.dot(l_vmem[...], z[:, CP:2 * CP].astype(cdt),
                            preferred_element_type=jnp.float32)
    if K2 > 2:  # rare: K_mix defaults to 2
        u0f = hb.astype(jnp.float32)
        u1f = jnp.dot(l_vmem[...], hb, preferred_element_type=jnp.float32)
        for k in range(2, K2):
            u2f = (2.0 * jnp.dot(l_vmem[...], u1f.astype(cdt),
                                 preferred_element_type=jnp.float32) - u0f)
            out = out + jnp.dot(u2f.astype(cdt), w2_ref[:, k * CP:(k + 1) * CP],
                                preferred_element_type=jnp.float32)
            u0f, u1f = u1f, u2f

    o_ref[...] = out + b2_ref[...]


# --------------------------- input preparation ------------------------------

def _prepare_inputs(l_hat, x, w1, b1, w2, b2, compute_dtype):
    """Pad node/feature dims, stack per-order weights, cast to compute dtype.

    NOTE(perf): for a fixed model these padded/stacked weights should be
    computed once and cached; here they live inside the jit'ed forward.
    """
    K1, F, H = w1.shape
    K2, _, C = w2.shape
    N = x.shape[0]
    HP = _round_up(H, 128)
    CP = _round_up(C, 128)
    RT, NP = _choose_row_tile(N)

    # Zero-padded graph: extra rows/cols of L and rows of x are inert through
    # the whole network (their outputs are sliced away).
    lp = jnp.zeros((NP, NP), jnp.float32).at[:N, :N].set(l_hat.astype(jnp.float32))
    xp = jnp.zeros((NP, F), jnp.float32).at[:N, :].set(x.astype(jnp.float32))

    # Kipfblock1 weights: [K1, F, H] -> [K1*F, HP]; rows ordered (k, f) to
    # match the [tx0 | tx1 | ...] basis layout.  Padded columns = 0.
    w1p = jnp.zeros((K1 * F, HP), jnp.float32).at[:, :H].set(
        w1.reshape(K1 * F, H).astype(jnp.float32))
    b1p = jnp.zeros((1, HP), jnp.float32).at[0, :H].set(
        b1.reshape(-1).astype(jnp.float32))

    # conv_mix weights: [K2, H, C] -> [HP, K2*CP]; column block k is w2[k].
    w2p = jnp.zeros((K2, HP, CP), jnp.float32).at[:, :H, :C].set(
        w2.astype(jnp.float32))
    w2p = jnp.transpose(w2p, (1, 0, 2)).reshape(HP, K2 * CP)
    b2p = jnp.zeros((1, CP), jnp.float32).at[0, :C].set(
        b2.reshape(-1).astype(jnp.float32))

    lb = lp.astype(compute_dtype)
    xb = xp.astype(compute_dtype)
    w1b = w1p.astype(compute_dtype)
    w2b = w2p.astype(compute_dtype)
    dims = dict(K1=K1, K2=K2, F=F, HP=HP, CP=CP, RT=RT, NP=NP)
    return lb, xb, w1b, b1p, w2b, b2p, dims


# ------------------------------- forward ------------------------------------

@functools.partial(jax.jit, static_argnames=("compute_dtype",))
def kipfnet_forward(l_hat, x, w1, b1, w2, b2, *, compute_dtype=jnp.bfloat16):
    """Runs the whole KipfNet forward in one Pallas kernel (VMEM-resident)."""
    N, F = x.shape
    C = w2.shape[-1]
    lb, xb, w1b, b1p, w2b, b2p, d = _prepare_inputs(
        l_hat, x, w1, b1, w2, b2, compute_dtype)
    K1, K2 = d["K1"], d["K2"]
    HP, CP, RT, NP = d["HP"], d["CP"], d["RT"], d["NP"]
    n_tiles = NP // RT

    it = jnp.dtype(compute_dtype).itemsize
    flops = (2 * max(K1 - 1, 0) * NP * NP * F        # basis recurrence L @ t_k
             + 2 * NP * (K1 * F) * HP                # stacked matmul 1
             + 2 * NP * HP * (K2 * CP)               # stacked matmul 2 (h @ w2)
             + 2 * max(K2 - 1, 0) * NP * NP * CP)    # L @ z terms
    bytes_accessed = (NP * NP * it + NP * F * it + K1 * F * HP * it + HP * 4
                      + HP * K2 * CP * it + CP * 4 + NP * CP * 4)

    # Explicit VMEM budget: L scratch + basis + t1 carry + inputs + output +
    # f32 intermediates (h, z, recurrence carries), plus ~50% headroom for
    # compiler scratch / spills.  Without this the default scoped limit
    # (16 MiB v5e / 32 MiB v6e,v7x) caps resident N far below physical VMEM.
    vmem_need = (NP * NP * it                        # L scratch
                 + NP * K1 * F * it                  # basis scratch
                 + NP * F * 4                        # t1 f32 scratch
                 + NP * F * it                       # x
                 + K1 * F * HP * it + HP * 4         # w1, b1
                 + HP * K2 * CP * it + CP * 4        # w2, b2
                 + NP * CP * 4                       # output
                 + NP * HP * 4 + NP * K2 * CP * 4    # h, z (f32)
                 + 4 * NP * F * 4)                   # recurrence carries (f32)
    vmem_limit = int(min(max(vmem_need * 3 // 2, 32 * 1024 * 1024),
                         128 * 1024 * 1024))

    kernel = functools.partial(_kipfnet_kernel, K1=K1, K2=K2, F=F, CP=CP,
                               RT=RT, n_tiles=n_tiles)
    vmem_spec = pl.BlockSpec(memory_space=pltpu.MemorySpace.VMEM)
    out = pl.pallas_call(
        kernel,
        out_shape=jax.ShapeDtypeStruct((NP, CP), jnp.float32),
        # grid=() -> kernel runs once; L stays in HBM (pl.ANY) and is streamed
        # in manually, everything else is whole-array VMEM, single-buffered.
        in_specs=[pl.BlockSpec(memory_space=pl.ANY)] + [vmem_spec] * 5,
        out_specs=vmem_spec,
        scratch_shapes=[
            pltpu.VMEM((NP, NP), compute_dtype),      # L, filled by manual DMA
            pltpu.VMEM((NP, K1 * F), compute_dtype),  # Chebyshev basis
            pltpu.VMEM((NP, F), jnp.float32),         # t1 carry (f32)
            pltpu.SemaphoreType.DMA((2,)),            # double-buffered L DMA
        ],
        compiler_params=pltpu.CompilerParams(vmem_limit_bytes=vmem_limit),
        cost_estimate=pl.CostEstimate(flops=int(flops), transcendentals=0,
                                      bytes_accessed=int(bytes_accessed)),
    )(lb, xb, w1b, b1p, w2b, b2p)
    return out[:N, :C]   # lane-dense [NP, CP] slab inside; narrow slice outside


# --------------------------- references / test ------------------------------

def build_scaled_laplacian(edge_index, num_nodes):
    """Dense L_hat = -D^{-1/2} A D^{-1/2} (ChebConv 'sym' norm, lambda_max=2)."""
    row, col = edge_index
    w = jnp.ones(row.shape[0], dtype=jnp.float32)
    deg = jnp.zeros((num_nodes,), jnp.float32).at[row].add(w)
    dinv = jnp.where(deg > 0, 1.0 / jnp.sqrt(deg), 0.0)
    vals = -dinv[row] * w * dinv[col]
    L = jnp.zeros((num_nodes, num_nodes), jnp.float32).at[row, col].add(vals)
    return L  # diagonal is exactly 0 after the +I (laplacian) and -I (self-loop) cancel


def _struct_math(L, x, w1, b1, w2, b2, *, K1, K2, F, CP):
    """Pure-jnp mirror of the kernel math (same precision/casting decisions)."""
    cdt = x.dtype
    txs = [x]
    if K1 > 1:
        t1f = jnp.dot(L, x, preferred_element_type=jnp.float32)
        txs.append(t1f.astype(cdt))
        t0f = x.astype(jnp.float32)
        for _ in range(2, K1):
            t2f = (2.0 * jnp.dot(L, t1f.astype(cdt),
                                 preferred_element_type=jnp.float32) - t0f)
            txs.append(t2f.astype(cdt))
            t0f, t1f = t1f, t2f
    basis = jnp.concatenate(txs, axis=-1) if len(txs) > 1 else x
    h = jnp.maximum(jnp.dot(basis, w1, preferred_element_type=jnp.float32) + b1, 0.0)
    hb = h.astype(cdt)
    z = jnp.dot(hb, w2, preferred_element_type=jnp.float32)
    out = z[:, :CP]
    if K2 > 1:
        out = out + jnp.dot(L, z[:, CP:2 * CP].astype(cdt),
                            preferred_element_type=jnp.float32)
    if K2 > 2:
        u0f = hb.astype(jnp.float32)
        u1f = jnp.dot(L, hb, preferred_element_type=jnp.float32)
        for k in range(2, K2):
            u2f = (2.0 * jnp.dot(L, u1f.astype(cdt),
                                 preferred_element_type=jnp.float32) - u0f)
            out = out + jnp.dot(u2f.astype(cdt), w2[:, k * CP:(k + 1) * CP],
                                preferred_element_type=jnp.float32)
            u0f, u1f = u1f, u2f
    return out + b2


def kipfnet_struct_ref(l_hat, x, w1, b1, w2, b2, *, compute_dtype=jnp.bfloat16):
    """Plain-JAX reference with the exact same padding / casting / grouping as
    the kernel (isolates Pallas-lowering bugs from precision effects)."""
    N = x.shape[0]
    C = w2.shape[-1]
    lb, xb, w1b, b1p, w2b, b2p, d = _prepare_inputs(
        l_hat, x, w1, b1, w2, b2, compute_dtype)
    out = _struct_math(lb, xb, w1b, b1p, w2b, b2p,
                       K1=d["K1"], K2=d["K2"], F=d["F"], CP=d["CP"])
    return out[:N, :C]


def _cheb_ref(L, x, w, b):
    hp = jax.lax.Precision.HIGHEST
    K = w.shape[0]
    tx0 = x
    out = jnp.dot(tx0, w[0], precision=hp)
    if K > 1:
        tx1 = jnp.dot(L, tx0, precision=hp)
        out = out + jnp.dot(tx1, w[1], precision=hp)
        for k in range(2, K):
            tx2 = 2.0 * jnp.dot(L, tx1, precision=hp) - tx0
            out = out + jnp.dot(tx2, w[k], precision=hp)
            tx0, tx1 = tx1, tx2
    return out + b


def kipfnet_f32_ref(l_hat, x, w1, b1, w2, b2):
    h = jnp.maximum(_cheb_ref(l_hat, x, w1, b1.reshape(1, -1)), 0.0)
    return _cheb_ref(l_hat, h, w2, b2.reshape(1, -1))


if __name__ == "__main__":
    # Small, deterministic problem: N=16 nodes, num_features=8, nh1=32, classes=4.
    N, F_IN, NH1, NCLS, K, K_MIX = 16, 8, 32, 4, 8, 2

    key = jax.random.PRNGKey(0)
    kx, kw1, kb1, kw2, kb2 = jax.random.split(key, 5)

    # Deterministic ring graph (edges in both directions).
    src = jnp.arange(N, dtype=jnp.int32)
    dst = (src + 1) % N
    edge_index = (jnp.concatenate([src, dst]), jnp.concatenate([dst, src]))
    l_hat = build_scaled_laplacian(edge_index, N)

    x = jax.random.normal(kx, (N, F_IN), dtype=jnp.float32)
    # ChebConv weights: [K, in, out], bias: [out].
    w1 = jax.random.normal(kw1, (K, F_IN, NH1), jnp.float32) * (2.0 / (F_IN + NH1)) ** 0.5
    b1 = jax.random.normal(kb1, (NH1,), jnp.float32) * 0.01
    w2 = jax.random.normal(kw2, (K_MIX, NH1, NCLS), jnp.float32) * (2.0 / (NH1 + NCLS)) ** 0.5
    b2 = jax.random.normal(kb2, (NCLS,), jnp.float32) * 0.01

    ref_f32 = kipfnet_f32_ref(l_hat, x, w1, b1, w2, b2)

    # --- f32 compute path: tight structural check ---------------------------
    out_f32 = jax.block_until_ready(
        kipfnet_forward(l_hat, x, w1, b1, w2, b2, compute_dtype=jnp.float32))
    ref_f32_struct = kipfnet_struct_ref(l_hat, x, w1, b1, w2, b2,
                                        compute_dtype=jnp.float32)
    assert out_f32.shape == (N, NCLS)
    assert jnp.allclose(out_f32, ref_f32_struct, atol=2e-3, rtol=2e-3)

    # --- bf16 compute path (default / fast): structural check + sanity ------
    out_bf16 = jax.block_until_ready(kipfnet_forward(l_hat, x, w1, b1, w2, b2))
    ref_bf16_struct = kipfnet_struct_ref(l_hat, x, w1, b1, w2, b2)
    assert out_bf16.shape == (N, NCLS)
    assert jnp.allclose(out_bf16, ref_bf16_struct, atol=2e-2, rtol=2e-2)

    # Aggregate bf16-precision sanity bound vs. the full-f32 reference.
    rel = jnp.linalg.norm(out_bf16 - ref_f32) / jnp.linalg.norm(ref_f32)
    assert rel < 5e-2, f"bf16 relative error too large: {rel}"

    print("KERNEL_OK")
</pallas_src>

<mosaic_0001>
module attributes {stable_mosaic.version = 11 : i64} {
  func.func @_kipfnet_kernel(%arg0: memref<16x16xf32, #tpu.memory_space<any>>, %arg1: memref<16x8xf32, #tpu.memory_space<vmem>>, %arg2: memref<64x128xf32, #tpu.memory_space<vmem>>, %arg3: memref<1x128xf32, #tpu.memory_space<vmem>>, %arg4: memref<128x256xf32, #tpu.memory_space<vmem>>, %arg5: memref<1x128xf32, #tpu.memory_space<vmem>>, %arg6: memref<16x128xf32, #tpu.memory_space<vmem>>, %arg7: memref<16x16xf32, #tpu.memory_space<vmem>>, %arg8: memref<16x64xf32, #tpu.memory_space<vmem>>, %arg9: memref<16x8xf32, #tpu.memory_space<vmem>>, %arg10: memref<2x!tpu.dma_semaphore, #tpu.memory_space<semaphore_mem>>) attributes {dimension_semantics = [], scalar_prefetch = 0 : i64, scratch_operands = 4 : i64, tpu.core_type = #tpu.core_type<tc>} {
    %c0_i32 = arith.constant 0 : i32
    %c0_i32_0 = arith.constant 0 : i32
    %c0_i32_1 = arith.constant 0 : i32
    %0 = tpu.memref_slice %arg0[%c0_i32_0, %c0_i32_1] : memref<16x16xf32, #tpu.memory_space<any>> -> memref<16x16xf32, #tpu.memory_space<any>>
    %c0_i32_2 = arith.constant 0 : i32
    %c0_i32_3 = arith.constant 0 : i32
    %1 = tpu.memref_slice %arg7[%c0_i32_2, %c0_i32_3] : memref<16x16xf32, #tpu.memory_space<vmem>> -> memref<16x16xf32, #tpu.memory_space<vmem>>
    %2 = tpu.memref_slice %arg10[%c0_i32] : memref<2x!tpu.dma_semaphore, #tpu.memory_space<semaphore_mem>> -> memref<1x!tpu.dma_semaphore, #tpu.memory_space<semaphore_mem>>
    %3 = tpu.memref_squeeze %2 : memref<1x!tpu.dma_semaphore, #tpu.memory_space<semaphore_mem>> -> memref<!tpu.dma_semaphore, #tpu.memory_space<semaphore_mem>>
    tpu.enqueue_dma source(%0 : memref<16x16xf32, #tpu.memory_space<any>>) target(%1 : memref<16x16xf32, #tpu.memory_space<vmem>>) target_semaphore(%3 : memref<!tpu.dma_semaphore, #tpu.memory_space<semaphore_mem>>)
    %c0 = arith.constant 0 : index
    %c0_4 = arith.constant 0 : index
    %4 = vector.load %arg1[%c0, %c0_4] : memref<16x8xf32, #tpu.memory_space<vmem>>, vector<16x8xf32>
    %c0_5 = arith.constant 0 : index
    %c0_6 = arith.constant 0 : index
    %5 = vector.load %arg8[%c0_5, %c0_6] : memref<16x64xf32, #tpu.memory_space<vmem>>, vector<16x8xf32>
    tpu.vector_store %arg8[%c0_5, %c0_6], %4 {strides = array<i32>} : memref<16x64xf32, #tpu.memory_space<vmem>>, vector<16x8xf32>,
    %c0_i32_7 = arith.constant 0 : i32
    %c0_i32_8 = arith.constant 0 : i32
    %c0_i32_9 = arith.constant 0 : i32
    %6 = tpu.memref_slice %arg0[%c0_i32_8, %c0_i32_9] : memref<16x16xf32, #tpu.memory_space<any>> -> memref<16x16xf32, #tpu.memory_space<any>>
    %c0_i32_10 = arith.constant 0 : i32
    %c0_i32_11 = arith.constant 0 : i32
    %7 = tpu.memref_slice %arg7[%c0_i32_10, %c0_i32_11] : memref<16x16xf32, #tpu.memory_space<vmem>> -> memref<16x16xf32, #tpu.memory_space<vmem>>
    %8 = tpu.memref_slice %arg10[%c0_i32_7] : memref<2x!tpu.dma_semaphore, #tpu.memory_space<semaphore_mem>> -> memref<1x!tpu.dma_semaphore, #tpu.memory_space<semaphore_mem>>
    %9 = tpu.memref_squeeze %8 : memref<1x!tpu.dma_semaphore, #tpu.memory_space<semaphore_mem>> -> memref<!tpu.dma_semaphore, #tpu.memory_space<semaphore_mem>>
    tpu.wait_dma2 semaphore(%9 : memref<!tpu.dma_semaphore, #tpu.memory_space<semaphore_mem>>) src(%6 : memref<16x16xf32, #tpu.memory_space<any>>) dst(%7 : memref<16x16xf32, #tpu.memory_space<vmem>>)
    %c0_12 = arith.constant 0 : index
    %c0_13 = arith.constant 0 : index
    %10 = vector.load %arg7[%c0_12, %c0_13] : memref<16x16xf32, #tpu.memory_space<vmem>>, vector<16x16xf32>
    %cst = arith.constant dense<0.000000e+00> : vector<16x8xf32>
    %11 = tpu.matmul %10, %4, %cst {dimension_numbers = #tpu.dot_dimension_numbers<[1], [0], [0], [1], [0, 0, 1, 1], [], []>} : vector<16x16xf32>, vector<16x8xf32>, vector<16x8xf32> -> vector<16x8xf32>
    %c0_14 = arith.constant 0 : index
    %c0_15 = arith.constant 0 : index
    %12 = vector.load %arg9[%c0_14, %c0_15] : memref<16x8xf32, #tpu.memory_space<vmem>>, vector<16x8xf32>
    tpu.vector_store %arg9[%c0_14, %c0_15], %11 {strides = array<i32>} : memref<16x8xf32, #tpu.memory_space<vmem>>, vector<16x8xf32>,
    %c0_16 = arith.constant 0 : index
    %c8 = arith.constant 8 : index
    %13 = vector.load %arg8[%c0_16, %c8] : memref<16x64xf32, #tpu.memory_space<vmem>>, vector<16x8xf32>
    tpu.vector_store %arg8[%c0_16, %c8], %11 {strides = array<i32>} : memref<16x64xf32, #tpu.memory_space<vmem>>, vector<16x8xf32>,
    %c0_17 = arith.constant 0 : index
    %c0_18 = arith.constant 0 : index
    %14 = vector.load %arg9[%c0_17, %c0_18] : memref<16x8xf32, #tpu.memory_space<vmem>>, vector<16x8xf32>
    %c0_19 = arith.constant 0 : index
    %c0_20 = arith.constant 0 : index
    %15 = vector.load %arg7[%c0_19, %c0_20] : memref<16x16xf32, #tpu.memory_space<vmem>>, vector<16x16xf32>
    %cst_21 = arith.constant dense<0.000000e+00> : vector<16x8xf32>
    %16 = tpu.matmul %15, %14, %cst_21 {dimension_numbers = #tpu.dot_dimension_numbers<[1], [0], [0], [1], [0, 0, 1, 1], [], []>} : vector<16x16xf32>, vector<16x8xf32>, vector<16x8xf32> -> vector<16x8xf32>
    %cst_22 = arith.constant 2.000000e+00 : f32
    %17 = vector.broadcast %cst_22 : f32 to vector<16x8xf32>
    %18 = arith.mulf %17, %16 : vector<16x8xf32>
    %19 = arith.subf %18, %4 : vector<16x8xf32>
    %c0_23 = arith.constant 0 : index
    %c16 = arith.constant 16 : index
    %20 = vector.load %arg8[%c0_23, %c16] : memref<16x64xf32, #tpu.memory_space<vmem>>, vector<16x8xf32>
    tpu.vector_store %arg8[%c0_23, %c16], %19 {strides = array<i32>} : memref<16x64xf32, #tpu.memory_space<vmem>>, vector<16x8xf32>,
    %c0_24 = arith.constant 0 : index
    %c0_25 = arith.constant 0 : index
    %21 = vector.load %arg7[%c0_24, %c0_25] : memref<16x16xf32, #tpu.memory_space<vmem>>, vector<16x16xf32>
    %cst_26 = arith.constant dense<0.000000e+00> : vector<16x8xf32>
    %22 = tpu.matmul %21, %19, %cst_26 {dimension_numbers = #tpu.dot_dimension_numbers<[1], [0], [0], [1], [0, 0, 1, 1], [], []>} : vector<16x16xf32>, vector<16x8xf32>, vector<16x8xf32> -> vector<16x8xf32>
    %cst_27 = arith.constant 2.000000e+00 : f32
    %23 = vector.broadcast %cst_27 : f32 to vector<16x8xf32>
    %24 = arith.mulf %23, %22 : vector<16x8xf32>
    %25 = arith.subf %24, %14 : vector<16x8xf32>
    %c0_28 = arith.constant 0 : index
    %c24 = arith.constant 24 : index
    %26 = vector.load %arg8[%c0_28, %c24] : memref<16x64xf32, #tpu.memory_space<vmem>>, vector<16x8xf32>
    tpu.vector_store %arg8[%c0_28, %c24], %25 {strides = array<i32>} : memref<16x64xf32, #tpu.memory_space<vmem>>, vector<16x8xf32>,
    %c0_29 = arith.constant 0 : index
    %c0_30 = arith.constant 0 : index
    %27 = vector.load %arg7[%c0_29, %c0_30] : memref<16x16xf32, #tpu.memory_space<vmem>>, vector<16x16xf32>
    %cst_31 = arith.constant dense<0.000000e+00> : vector<16x8xf32>
    %28 = tpu.matmul %27, %25, %cst_31 {dimension_numbers = #tpu.dot_dimension_numbers<[1], [0], [0], [1], [0, 0, 1, 1], [], []>} : vector<16x16xf32>, vector<16x8xf32>, vector<16x8xf32> -> vector<16x8xf32>
    %cst_32 = arith.constant 2.000000e+00 : f32
    %29 = vector.broadcast %cst_32 : f32 to vector<16x8xf32>
    %30 = arith.mulf %29, %28 : vector<16x8xf32>
    %31 = arith.subf %30, %19 : vector<16x8xf32>
    %c0_33 = arith.constant 0 : index
    %c32 = arith.constant 32 : index
    %32 = vector.load %arg8[%c0_33, %c32] : memref<16x64xf32, #tpu.memory_space<vmem>>, vector<16x8xf32>
    tpu.vector_store %arg8[%c0_33, %c32], %31 {strides = array<i32>} : memref<16x64xf32, #tpu.memory_space<vmem>>, vector<16x8xf32>,
    %c0_34 = arith.constant 0 : index
    %c0_35 = arith.constant 0 : index
    %33 = vector.load %arg7[%c0_34, %c0_35] : memref<16x16xf32, #tpu.memory_space<vmem>>, vector<16x16xf32>
    %cst_36 = arith.constant dense<0.000000e+00> : vector<16x8xf32>
    %34 = tpu.matmul %33, %31, %cst_36 {dimension_numbers = #tpu.dot_dimension_numbers<[1], [0], [0], [1], [0, 0, 1, 1], [], []>} : vector<16x16xf32>, vector<16x8xf32>, vector<16x8xf32> -> vector<16x8xf32>
    %cst_37 = arith.constant 2.000000e+00 : f32
    %35 = vector.broadcast %cst_37 : f32 to vector<16x8xf32>
    %36 = arith.mulf %35, %34 : vector<16x8xf32>
    %37 = arith.subf %36, %25 : vector<16x8xf32>
    %c0_38 = arith.constant 0 : index
    %c40 = arith.constant 40 : index
    %38 = vector.load %arg8[%c0_38, %c40] : memref<16x64xf32, #tpu.memory_space<vmem>>, vector<16x8xf32>
    tpu.vector_store %arg8[%c0_38, %c40], %37 {strides = array<i32>} : memref<16x64xf32, #tpu.memory_space<vmem>>, vector<16x8xf32>,
    %c0_39 = arith.constant 0 : index
    %c0_40 = arith.constant 0 : index
    %39 = vector.load %arg7[%c0_39, %c0_40] : memref<16x16xf32, #tpu.memory_space<vmem>>, vector<16x16xf32>
    %cst_41 = arith.constant dense<0.000000e+00> : vector<16x8xf32>
    %40 = tpu.matmul %39, %37, %cst_41 {dimension_numbers = #tpu.dot_dimension_numbers<[1], [0], [0], [1], [0, 0, 1, 1], [], []>} : vector<16x16xf32>, vector<16x8xf32>, vector<16x8xf32> -> vector<16x8xf32>
    %cst_42 = arith.constant 2.000000e+00 : f32
    %41 = vector.broadcast %cst_42 : f32 to vector<16x8xf32>
    %42 = arith.mulf %41, %40 : vector<16x8xf32>
    %43 = arith.subf %42, %31 : vector<16x8xf32>
    %c0_43 = arith.constant 0 : index
    %c48 = arith.constant 48 : index
    %44 = vector.load %arg8[%c0_43, %c48] : memref<16x64xf32, #tpu.memory_space<vmem>>, vector<16x8xf32>
    tpu.vector_store %arg8[%c0_43, %c48], %43 {strides = array<i32>} : memref<16x64xf32, #tpu.memory_space<vmem>>, vector<16x8xf32>,
    %c0_44 = arith.constant 0 : index
    %c0_45 = arith.constant 0 : index
    %45 = vector.load %arg7[%c0_44, %c0_45] : memref<16x16xf32, #tpu.memory_space<vmem>>, vector<16x16xf32>
    %cst_46 = arith.constant dense<0.000000e+00> : vector<16x8xf32>
    %46 = tpu.matmul %45, %43, %cst_46 {dimension_numbers = #tpu.dot_dimension_numbers<[1], [0], [0], [1], [0, 0, 1, 1], [], []>} : vector<16x16xf32>, vector<16x8xf32>, vector<16x8xf32> -> vector<16x8xf32>
    %cst_47 = arith.constant 2.000000e+00 : f32
    %47 = vector.broadcast %cst_47 : f32 to vector<16x8xf32>
    %48 = arith.mulf %47, %46 : vector<16x8xf32>
    %49 = arith.subf %48, %37 : vector<16x8xf32>
    %c0_48 = arith.constant 0 : index
    %c56 = arith.constant 56 : index
    %50 = vector.load %arg8[%c0_48, %c56] : memref<16x64xf32, #tpu.memory_space<vmem>>, vector<16x8xf32>
    tpu.vector_store %arg8[%c0_48, %c56], %49 {strides = array<i32>} : memref<16x64xf32, #tpu.memory_space<vmem>>, vector<16x8xf32>,
    %c0_49 = arith.constant 0 : index
    %c0_50 = arith.constant 0 : index
    %51 = vector.load %arg8[%c0_49, %c0_50] : memref<16x64xf32, #tpu.memory_space<vmem>>, vector<16x64xf32>
    %c0_51 = arith.constant 0 : index
    %c0_52 = arith.constant 0 : index
    %52 = vector.load %arg2[%c0_51, %c0_52] : memref<64x128xf32, #tpu.memory_space<vmem>>, vector<64x128xf32>
    %cst_53 = arith.constant dense<0.000000e+00> : vector<16x128xf32>
    %53 = tpu.matmul %51, %52, %cst_53 {dimension_numbers = #tpu.dot_dimension_numbers<[1], [0], [0], [1], [0, 0, 1, 1], [], []>} : vector<16x64xf32>, vector<64x128xf32>, vector<16x128xf32> -> vector<16x128xf32>
    %c0_54 = arith.constant 0 : index
    %c0_55 = arith.constant 0 : index
    %54 = vector.load %arg3[%c0_54, %c0_55] : memref<1x128xf32, #tpu.memory_space<vmem>>, vector<1x128xf32>
    %55 = vector.broadcast %54 : vector<1x128xf32> to vector<16x128xf32>
    %56 = arith.addf %53, %55 : vector<16x128xf32>
    %cst_56 = arith.constant 0.000000e+00 : f32
    %57 = vector.broadcast %cst_56 : f32 to vector<16x128xf32>
    %58 = arith.maximumf %56, %57 : vector<16x128xf32>
    %c0_57 = arith.constant 0 : index
    %c0_58 = arith.constant 0 : index
    %59 = vector.load %arg4[%c0_57, %c0_58] : memref<128x256xf32, #tpu.memory_space<vmem>>, vector<128x256xf32>
    %cst_59 = arith.constant dense<0.000000e+00> : vector<16x256xf32>
    %60 = tpu.matmul %58, %59, %cst_59 {dimension_numbers = #tpu.dot_dimension_numbers<[1], [0], [0], [1], [0, 0, 1, 1], [], []>} : vector<16x128xf32>, vector<128x256xf32>, vector<16x256xf32> -> vector<16x256xf32>
    %61 = vector.extract_strided_slice %60 {offsets = [0, 0], sizes = [16, 128], strides = [1, 1]} : vector<16x256xf32> to vector<16x128xf32>
    %c0_60 = arith.constant 0 : index
    %c0_61 = arith.constant 0 : index
    %62 = vector.load %arg7[%c0_60, %c0_61] : memref<16x16xf32, #tpu.memory_space<vmem>>, vector<16x16xf32>
    %63 = vector.extract_strided_slice %60 {offsets = [0, 128], sizes = [16, 128], strides = [1, 1]} : vector<16x256xf32> to vector<16x128xf32>
    %cst_62 = arith.constant dense<0.000000e+00> : vector<16x128xf32>
    %64 = tpu.matmul %62, %63, %cst_62 {dimension_numbers = #tpu.dot_dimension_numbers<[1], [0], [0], [1], [0, 0, 1, 1], [], []>} : vector<16x16xf32>, vector<16x128xf32>, vector<16x128xf32> -> vector<16x128xf32>
    %65 = arith.addf %61, %64 : vector<16x128xf32>
    %c0_63 = arith.constant 0 : index
    %c0_64 = arith.constant 0 : index
    %66 = vector.load %arg5[%c0_63, %c0_64] : memref<1x128xf32, #tpu.memory_space<vmem>>, vector<1x128xf32>
    %67 = vector.broadcast %66 : vector<1x128xf32> to vector<16x128xf32>
    %68 = arith.addf %65, %67 : vector<16x128xf32>
    %c0_65 = arith.constant 0 : index
    %c0_66 = arith.constant 0 : index
    %69 = vector.load %arg6[%c0_65, %c0_66] : memref<16x128xf32, #tpu.memory_space<vmem>>, vector<16x128xf32>
    tpu.vector_store %arg6[%c0_65, %c0_66], %68 {strides = array<i32>} : memref<16x128xf32, #tpu.memory_space<vmem>>, vector<16x128xf32>,
    return
  }
}

</mosaic_0001>

<llo_original>
// kernel: kipfnet_forward.1
$region0: #{kipfnet_forward.1}
  #allocation0 [shape = 'u32[]', space=smem, size = 0x4, offset = 0x4, fixed_abs, tag = 'smem constant byte address 0x4 - core index']
  #allocation1 [shape = 'u32[144,128]{1,0:T(1,128)}', space=vmem, size = 0x12000, scoped, tag = 'internal scratch']
  #allocation2 [shape = 'f32[16,16]{1,0:T(8,128)}', space=vmem, size = 0x2000, scoped, tag = 'scratch operand']
  #allocation3 [shape = 'f32[16,64]{1,0:T(8,128)}', space=vmem, size = 0x2000, scoped, tag = 'scratch operand']
  #allocation4 [shape = 'f32[16,8]{1,0:T(8,128)}', space=vmem, size = 0x2000, scoped, tag = 'scratch operand']
  #allocation5 [shape = 's32[2]{0}', space=sflag, size = 0x8, scoped, tag = 'scratch operand']
  #allocation6 [shape = 's32[]', space=sflag, size = 0x4, offset = 0, fixed_abs, tag = 'sflag constant byte address 0x0 - dummy sync flag']
  %s0 = inlined_call_operand.vmem [shape: f32[16,16], index: 0, kind: input, shape index: {}]
  %s1 = inlined_call_operand.vmem [shape: f32[16,8], index: 1, kind: input, shape index: {}]
  %s2 = inlined_call_operand.vmem [shape: f32[64,128], index: 2, kind: input, shape index: {}]
  %s3 = inlined_call_operand.vmem [shape: f32[1,128], index: 3, kind: input, shape index: {}]
  %s4 = inlined_call_operand.vmem [shape: f32[128,256], index: 4, kind: input, shape index: {}]
  %s5 = inlined_call_operand.vmem [shape: f32[1,128], index: 5, kind: input, shape index: {}]
  %s6 = inlined_call_operand.vmem [shape: f32[16,128], index: 6, kind: output, shape index: {}]
  %s7 = sld [smem:[#allocation0]]
  $region64: #{kipfnet_forward.1} parent=0
    _
  %s9 = ssub.s32 1, %s7
  %s10 = scalar_select 0, %s9, %s7
  // Predicated region
  $region2: #{kipfnet_forward.1} parent=0 // pred_check
    _
  $region3: #{kipfnet_forward.1} parent=0 // pred_check_branch
    %12 = sbr.rel (0) target = $region5
  $region4: #{kipfnet_forward.1} parent=0 // pred_region
    _
  $region5: #{kipfnet_forward.1} parent=0 // pred_fallthru
    _
  // Predicated region
  $region6: #{kipfnet_forward.1} parent=0 // pred_check
    _
  $region7: #{kipfnet_forward.1} parent=0 // pred_check_branch
    %14 = sbr.rel (0) target = $region9
  $region8: #{kipfnet_forward.1} parent=0 // pred_region
    _
  $region9: #{kipfnet_forward.1} parent=0 // pred_fallthru
    _
  // Predicated region
  $region10: #{kipfnet_forward.1} parent=0 // pred_check
    _
  $region11: #{kipfnet_forward.1} parent=0 // pred_check_branch
    %16 = sbr.rel (0) target = $region13
  $region12: #{kipfnet_forward.1} parent=0 // pred_region
    _
  $region13: #{kipfnet_forward.1} parent=0 // pred_fallthru
    _
  // Predicated region
  $region14: #{kipfnet_forward.1} parent=0 // pred_check
    _
  $region15: #{kipfnet_forward.1} parent=0 // pred_check_branch
    %18 = sbr.rel (0) target = $region17
  $region16: #{kipfnet_forward.1} parent=0 // pred_region
    _
  $region17: #{kipfnet_forward.1} parent=0 // pred_fallthru
    _
  // Predicated region
  $region18: #{kipfnet_forward.1} parent=0 // pred_check
    _
  $region19: #{kipfnet_forward.1} parent=0 // pred_check_branch
    %20 = sbr.rel (0) target = $region21
  $region20: #{kipfnet_forward.1} parent=0 // pred_region
    _
  $region21: #{kipfnet_forward.1} parent=0 // pred_fallthru
    _
  %p22 = scmp.lt.u32.totalorder 16, 8
  %p23 = pneg %p22
  // Predicated region
  $region22: #{kipfnet_forward.1} parent=0 // pred_check
    _
  $region23: #{kipfnet_forward.1} parent=0 // pred_check_branch
    %25 = sbr.rel (%p22) target = $region25
  $region24: #{kipfnet_forward.1} parent=0 // pred_region
    %s41 = sand.u32 16, 7
    %p42 = scmp.eq.s32.totalorder %s41, 0
    // Predicated region
    $region37: #{kipfnet_forward.1} parent=24 // pred_check
      %p43 = pneg %p42
    $region38: #{kipfnet_forward.1} parent=24 // pred_check_branch
      %45 = sbr.rel (%p43) target = $region40
    $region39: #{kipfnet_forward.1} parent=24 // pred_region
      loop: start=0, step=1, limit=1
      $region41: #{kipfnet_forward.1} parent=39 // loop_pre_header
        _
      $region42: #{kipfnet_forward.1} parent=39 // loop_header
        %s47 = sphi 0, %s51
        %p48 = scmp.ge.s32.totalorder %s47, 1
        %s52 = sphi %s0, %s0
        %s53 = sphi [#allocation2], [#allocation2]
      $region43: #{kipfnet_forward.1} parent=39 // loop_header_branch
        %50 = sbr.rel (%p48) target = $region47
      $region44: #{kipfnet_forward.1} parent=39 // loop_body
        %v54 = vld [vmem:[%s52] sm:$0xff]
        %55 = vst [vmem:[%s53] sm:$0xff] %v54
        %v56 = vld [vmem:[%s52 + $0x8] sm:$0xff]
        %57 = vst [vmem:[%s53 + $0x8] sm:$0xff] %v56
      $region45: #{kipfnet_forward.1} parent=39 // loop_footer
        %s51 = sadd.s32 1, %s47
      $region46: #{kipfnet_forward.1} parent=39 // loop_footer_branch
        %46 = sbr.rel target = $region42
      $region47: #{kipfnet_forward.1} parent=39 // loop_exit
        _
    $region40: #{kipfnet_forward.1} parent=24 // pred_fallthru
      _
    %p58 = pneg %p42
    // Predicated region
    $region48: #{kipfnet_forward.1} parent=24 // pred_check
      _
    $region49: #{kipfnet_forward.1} parent=24 // pred_check_branch
      %60 = sbr.rel (%p42) target = $region51
    $region50: #{kipfnet_forward.1} parent=24 // pred_region
      %s61 = sand.u32 16, 7
    $region51: #{kipfnet_forward.1} parent=24 // pred_fallthru
      _
  $region25: #{kipfnet_forward.1} parent=0 // pred_fallthru
    _
  // Predicated region
  $region26: #{kipfnet_forward.1} parent=0 // pred_check
    %p26 = pneg %p22
  $region27: #{kipfnet_forward.1} parent=0 // pred_check_branch
    %28 = sbr.rel (%p26) target = $region29
  $region28: #{kipfnet_forward.1} parent=0 // pred_region
    %s29 = sshll.u32 1, 16
    %s30 = ssub.s32 %s29, 1
    loop: start=0, step=1, limit=1
    $region30: #{kipfnet_forward.1} parent=28 // loop_pre_header
      _
    $region31: #{kipfnet_forward.1} parent=28 // loop_header
      %s32 = sphi 0, %s36
      %p33 = scmp.ge.s32.totalorder %s32, 1
      %s37 = sphi %s0, %s0
      %s38 = sphi [#allocation2], [#allocation2]
    $region32: #{kipfnet_forward.1} parent=28 // loop_header_branch
      %35 = sbr.rel (%p33) target = $region36
    $region33: #{kipfnet_forward.1} parent=28 // loop_body
      %v39 = vld [vmem:[%s37] sm:%s30]
      %40 = vst [vmem:[%s38] sm:%s30] %v39
    $region34: #{kipfnet_forward.1} parent=28 // loop_footer
      %s36 = sadd.s32 1, %s32
    $region35: #{kipfnet_forward.1} parent=28 // loop_footer_branch
      %31 = sbr.rel target = $region31
    $region36: #{kipfnet_forward.1} parent=28 // loop_exit
      _
  $region29: #{kipfnet_forward.1} parent=0 // pred_fallthru
    _
  // Predicated region
  $region52: #{kipfnet_forward.1} parent=0 // pred_check
    _
  $region53: #{kipfnet_forward.1} parent=0 // pred_check_branch
    %64 = sbr.rel (0) target = $region55
  $region54: #{kipfnet_forward.1} parent=0 // pred_region
    %65 = vsyncadd [#allocation5], 256
  $region55: #{kipfnet_forward.1} parent=0 // pred_fallthru
    _
  %v66 = vld [vmem:[%s1] sm:$0xff]
  %v67 = vld [vmem:[%s1 + $0x8] sm:$0xff]
  %vm68 = vcmask 64512
  %69 = vst.msk [vmem:[#allocation3] sm:$0xff] %vm68, %v66
  %70 = vst.msk [vmem:[#allocation3 + $0x8] sm:$0xff] %vm68, %v67
  %s71 = smul.u32 16, 1
  %s72 = sshll.u32 %s71, 4
  %73 = dma.done [#allocation5], %s72
  %v74 = vld [vmem:[#allocation2] sm:$0xff]
  %v75 = vld [vmem:[#allocation2 + $0x8] sm:$0xff]
  %vm76 = vcmask 130048
  %v78 = vsel %vm76, %v74, 0
  %v81 = vsel %vm76, %v75, 0
  %83 = vmatprep.subr.mxu0 0.0
  %84 = vmatpush1.msra.mxu0 0.0
  %85 = vmatprep.subr.mxu0 0.0
  %86 = vmatpush1.msra.mxu0 0.0
  %87 = vmatprep.subr.mxu0 0.0
  %88 = vmatpush1.msra.mxu0 0.0
  %89 = vmatprep.subr.mxu0 0.0
  %90 = vmatpush1.msra.mxu0 0.0
  %91 = vmatprep.subr.mxu0 0.0
  %92 = vmatpush1.msra.mxu0 0.0
  %93 = vmatprep.subr.mxu0 0.0
  %94 = vmatpush1.msra.mxu0 0.0
  %95 = vmatprep.subr.mxu0 0.0
  %96 = vmatpush1.msra.mxu0 0.0
  %97 = vmatprep.subr.mxu0 0.0
  %98 = vmatpush1.msra.mxu0 0.0
  %99 = vmatprep.subr.mxu0 0.0
  %100 = vmatpush1.msra.mxu0 0.0
  %101 = vmatprep.subr.mxu0 0.0
  %102 = vmatpush1.msra.mxu0 0.0
  %103 = vmatprep.subr.mxu0 0.0
  %104 = vmatpush1.msra.mxu0 0.0
  %105 = vmatprep.subr.mxu0 0.0
  %106 = vmatpush1.msra.mxu0 0.0
  %107 = vmatprep.subr.mxu0 0.0
  %108 = vmatpush1.msra.mxu0 0.0
  %109 = vmatprep.subr.mxu0 0.0
  %110 = vmatpush1.msra.mxu0 0.0
  %111 = vmatprep.subr.mxu0 0.0
  %112 = vmatpush1.msra.mxu0 %v67
  %113 = vmatprep.subr.mxu0 0.0
  %114 = vmatpush1.msra.mxu0 %v66
  %115 = vmatprep.subr.mxu0 0.0
  %116 = vmatpush2.msra.mxu0 0.0
  %117 = vmatprep.subr.mxu0 0.0
  %118 = vmatpush2.msra.mxu0 0.0
  %119 = vmatprep.subr.mxu0 0.0
  %120 = vmatpush2.msra.mxu0 0.0
  %121 = vmatprep.subr.mxu0 0.0
  %122 = vmatpush2.msra.mxu0 0.0
  %123 = vmatprep.subr.mxu0 0.0
  %124 = vmatpush2.msra.mxu0 0.0
  %125 = vmatprep.subr.mxu0 0.0
  %126 = vmatpush2.msra.mxu0 0.0
  %127 = vmatprep.subr.mxu0 0.0
  %128 = vmatpush2.msra.mxu0 0.0
  %129 = vmatprep.subr.mxu0 0.0
  %130 = vmatpush2.msra.mxu0 0.0
  %131 = vmatprep.subr.mxu0 0.0
  %132 = vmatpush2.msra.mxu0 0.0
  %133 = vmatprep.subr.mxu0 0.0
  %134 = vmatpush2.msra.mxu0 0.0
  %135 = vmatprep.subr.mxu0 0.0
  %136 = vmatpush2.msra.mxu0 0.0
  %137 = vmatprep.subr.mxu0 0.0
  %138 = vmatpush2.msra.mxu0 0.0
  %139 = vmatprep.subr.mxu0 0.0
  %140 = vmatpush2.msra.mxu0 0.0
  %141 = vmatprep.subr.mxu0 0.0
  %142 = vmatpush2.msra.mxu0 0.0
  %143 = vmatprep.subr.mxu0 0.0
  %144 = vmatpush2.msra.mxu0 0.0
  %145 = vmatprep.subr.mxu0 0.0
  %146 = vmatpush2.msra.mxu0 0.0
  %147 = vmatprep.mubr.f32.mxu0 0.0
  %148 = vmatmul.mubr.f32.gmra.mxu0 %v78
  %v149 = vpop.f32.mrf.mxu0
  %v150 = vadd.f32 0.0, %v149
  %v151 = vpop.f32.mrf.mxu0
  %152 = vmatprep.mubr.f32.mxu0 0.0
  %153 = vmatmul.mubr.f32.gmra.mxu0 %v81
  %v154 = vpop.f32.mrf.mxu0
  %v155 = vadd.f32 0.0, %v154
  %v156 = vpop.f32.mrf.mxu0
  %157 = vdwg.mxu0
  %158 = vst.msk [vmem:[#allocation4] sm:$0xff] %vm68, %v150
  %159 = vst.msk [vmem:[#allocation4 + $0x8] sm:$0xff] %vm68, %v155
  %162 = vrot.lane.b32.xlu0 %v150, 8
  %v163 = vpop.permute.xlu0 %162
  %164 = vrot.lane.b32.xlu0 %v155, 8
  %v165 = vpop.permute.xlu0 %164
  %vm168 = vcmask 130112
  %169 = vst.msk [vmem:[#allocation3] sm:$0xff] %vm168, %v163
  %170 = vst.msk [vmem:[#allocation3 + $0x8] sm:$0xff] %vm168, %v165
  %v171 = vld [vmem:[#allocation4] sm:$0xff]
  %v172 = vld [vmem:[#allocation4 + $0x8] sm:$0xff]
  %v173 = vld [vmem:[#allocation2] sm:$0xff]
  %v174 = vld [vmem:[#allocation2 + $0x8] sm:$0xff]
  %v176 = vsel %vm76, %v173, 0
  %v179 = vsel %vm76, %v174, 0
  %181 = vmatprep.subr.mxu0 0.0
  %182 = vmatpush1.msra.mxu0 0.0
  %183 = vmatprep.subr.mxu0 0.0
  %184 = vmatpush1.msra.mxu0 0.0
  %185 = vmatprep.subr.mxu0 0.0
  %186 = vmatpush1.msra.mxu0 0.0
  %187 = vmatprep.subr.mxu0 0.0
  %188 = vmatpush1.msra.mxu0 0.0
  %189 = vmatprep.subr.mxu0 0.0
  %190 = vmatpush1.msra.mxu0 0.0
  %191 = vmatprep.subr.mxu0 0.0
  %192 = vmatpush1.msra.mxu0 0.0
  %193 = vmatprep.subr.mxu0 0.0
  %194 = vmatpush1.msra.mxu0 0.0
  %195 = vmatprep.subr.mxu0 0.0
  %196 = vmatpush1.msra.mxu0 0.0
  %197 = vmatprep.subr.mxu0 0.0
  %198 = vmatpush1.msra.mxu0 0.0
  %199 = vmatprep.subr.mxu0 0.0
  %200 = vmatpush1.msra.mxu0 0.0
  %201 = vmatprep.subr.mxu0 0.0
  %202 = vmatpush1.msra.mxu0 0.0
  %203 = vmatprep.subr.mxu0 0.0
  %204 = vmatpush1.msra.mxu0 0.0
  %205 = vmatprep.subr.mxu0 0.0
  %206 = vmatpush1.msra.mxu0 0.0
  %207 = vmatprep.subr.mxu0 0.0
  %208 = vmatpush1.msra.mxu0 0.0
  %209 = vmatprep.subr.mxu0 0.0
  %210 = vmatpush1.msra.mxu0 %v172
  %211 = vmatprep.subr.mxu0 0.0
  %212 = vmatpush1.msra.mxu0 %v171
  %213 = vmatprep.subr.mxu0 0.0
  %214 = vmatpush2.msra.mxu0 0.0
  %215 = vmatprep.subr.mxu0 0.0
  %216 = vmatpush2.msra.mxu0 0.0
  %217 = vmatprep.subr.mxu0 0.0
  %218 = vmatpush2.msra.mxu0 0.0
  %219 = vmatprep.subr.mxu0 0.0
  %220 = vmatpush2.msra.mxu0 0.0
  %221 = vmatprep.subr.mxu0 0.0
  %222 = vmatpush2.msra.mxu0 0.0
  %223 = vmatprep.subr.mxu0 0.0
  %224 = vmatpush2.msra.mxu0 0.0
  %225 = vmatprep.subr.mxu0 0.0
  %226 = vmatpush2.msra.mxu0 0.0
  %227 = vmatprep.subr.mxu0 0.0
  %228 = vmatpush2.msra.mxu0 0.0
  %229 = vmatprep.subr.mxu0 0.0
  %230 = vmatpush2.msra.mxu0 0.0
  %231 = vmatprep.subr.mxu0 0.0
  %232 = vmatpush2.msra.mxu0 0.0
  %233 = vmatprep.subr.mxu0 0.0
  %234 = vmatpush2.msra.mxu0 0.0
  %235 = vmatprep.subr.mxu0 0.0
  %236 = vmatpush2.msra.mxu0 0.0
  %237 = vmatprep.subr.mxu0 0.0
  %238 = vmatpush2.msra.mxu0 0.0
  %239 = vmatprep.subr.mxu0 0.0
  %240 = vmatpush2.msra.mxu0 0.0
  %241 = vmatprep.subr.mxu0 0.0
  %242 = vmatpush2.msra.mxu0 0.0
  %243 = vmatprep.subr.mxu0 0.0
  %244 = vmatpush2.msra.mxu0 0.0
  %245 = vmatprep.mubr.f32.mxu0 0.0
  %246 = vmatmul.mubr.f32.gmra.mxu0 %v176
  %v247 = vpop.f32.mrf.mxu0
  %v248 = vadd.f32 0.0, %v247
  %v249 = vpop.f32.mrf.mxu0
  %250 = vmatprep.mubr.f32.mxu0 0.0
  %251 = vmatmul.mubr.f32.gmra.mxu0 %v179
  %v252 = vpop.f32.mrf.mxu0
  %v253 = vadd.f32 0.0, %v252
  %v254 = vpop.f32.mrf.mxu0
  %255 = vdwg.mxu0
  %v256 = vmul.f32 %v248, 2.0
  %v257 = vmul.f32 %v253, 2.0
  %v258 = vsub.f32 %v256, %v66
  %v259 = vsub.f32 %v257, %v67
  %262 = vrot.lane.b32.xlu0 %v258, 16
  %v263 = vpop.permute.xlu0 %262
  %264 = vrot.lane.b32.xlu0 %v259, 16
  %v265 = vpop.permute.xlu0 %264
  %vm268 = vcmask 195712
  %269 = vst.msk [vmem:[#allocation3] sm:$0xff] %vm268, %v263
  %270 = vst.msk [vmem:[#allocation3 + $0x8] sm:$0xff] %vm268, %v265
  %v271 = vld [vmem:[#allocation2] sm:$0xff]
  %v272 = vld [vmem:[#allocation2 + $0x8] sm:$0xff]
  %v274 = vsel %vm76, %v271, 0
  %v277 = vsel %vm76, %v272, 0
  %279 = vmatprep.subr.mxu0 0.0
  %280 = vmatpush1.msra.mxu0 0.0
  %281 = vmatprep.subr.mxu0 0.0
  %282 = vmatpush1.msra.mxu0 0.0
  %283 = vmatprep.subr.mxu0 0.0
  %284 = vmatpush1.msra.mxu0 0.0
  %285 = vmatprep.subr.mxu0 0.0
  %286 = vmatpush1.msra.mxu0 0.0
  %287 = vmatprep.subr.mxu0 0.0
  %288 = vmatpush1.msra.mxu0 0.0
  %289 = vmatprep.subr.mxu0 0.0
  %290 = vmatpush1.msra.mxu0 0.0
  %291 = vmatprep.subr.mxu0 0.0
  %292 = vmatpush1.msra.mxu0 0.0
  %293 = vmatprep.subr.mxu0 0.0
  %294 = vmatpush1.msra.mxu0 0.0
  %295 = vmatprep.subr.mxu0 0.0
  %296 = vmatpush1.msra.mxu0 0.0
  %297 = vmatprep.subr.mxu0 0.0
  %298 = vmatpush1.msra.mxu0 0.0
  %299 = vmatprep.subr.mxu0 0.0
  %300 = vmatpush1.msra.mxu0 0.0
  %301 = vmatprep.subr.mxu0 0.0
  %302 = vmatpush1.msra.mxu0 0.0
  %303 = vmatprep.subr.mxu0 0.0
  %304 = vmatpush1.msra.mxu0 0.0
  %305 = vmatprep.subr.mxu0 0.0
  %306 = vmatpush1.msra.mxu0 0.0
  %307 = vmatprep.subr.mxu0 0.0
  %308 = vmatpush1.msra.mxu0 %v259
  %309 = vmatprep.subr.mxu0 0.0
  %310 = vmatpush1.msra.mxu0 %v258
  %311 = vmatprep.subr.mxu0 0.0
  %312 = vmatpush2.msra.mxu0 0.0
  %313 = vmatprep.subr.mxu0 0.0
  %314 = vmatpush2.msra.mxu0 0.0
  %315 = vmatprep.subr.mxu0 0.0
  %316 = vmatpush2.msra.mxu0 0.0
  %317 = vmatprep.subr.mxu0 0.0
  %318 = vmatpush2.msra.mxu0 0.0
  %319 = vmatprep.subr.mxu0 0.0
  %320 = vmatpush2.msra.mxu0 0.0
  %321 = vmatprep.subr.mxu0 0.0
  %322 = vmatpush2.msra.mxu0 0.0
  %323 = vmatprep.subr.mxu0 0.0
  %324 = vmatpush2.msra.mxu0 0.0
  %325 = vmatprep.subr.mxu0 0.0
  %326 = vmatpush2.msra.mxu0 0.0
  %327 = vmatprep.subr.mxu0 0.0
  %328 = vmatpush2.msra.mxu0 0.0
  %329 = vmatprep.subr.mxu0 0.0
  %330 = vmatpush2.msra.mxu0 0.0
  %331 = vmatprep.subr.mxu0 0.0
  %332 = vmatpush2.msra.mxu0 0.0
  %333 = vmatprep.subr.mxu0 0.0
  %334 = vmatpush2.msra.mxu0 0.0
  %335 = vmatprep.subr.mxu0 0.0
  %336 = vmatpush2.msra.mxu0 0.0
  %337 = vmatprep.subr.mxu0 0.0
  %338 = vmatpush2.msra.mxu0 0.0
  %339 = vmatprep.subr.mxu0 0.0
  %340 = vmatpush2.msra.mxu0 0.0
  %341 = vmatprep.subr.mxu0 0.0
  %342 = vmatpush2.msra.mxu0 0.0
  %343 = vmatprep.mubr.f32.mxu0 0.0
  %344 = vmatmul.mubr.f32.gmra.mxu0 %v274
  %v345 = vpop.f32.mrf.mxu0
  %v346 = vadd.f32 0.0, %v345
  %v347 = vpop.f32.mrf.mxu0
  %348 = vmatprep.mubr.f32.mxu0 0.0
  %349 = vmatmul.mubr.f32.gmra.mxu0 %v277
  %v350 = vpop.f32.mrf.mxu0
  %v351 = vadd.f32 0.0, %v350
  %v352 = vpop.f32.mrf.mxu0
  %353 = vdwg.mxu0
  %v354 = vmul.f32 %v346, 2.0
  %v355 = vmul.f32 %v351, 2.0
  %v356 = vsub.f32 %v354, %v171
  %v357 = vsub.f32 %v355, %v172
  %360 = vrot.lane.b32.xlu0 %v356, 24
  %v361 = vpop.permute.xlu0 %360
  %362 = vrot.lane.b32.xlu0 %v357, 24
  %v363 = vpop.permute.xlu0 %362
  %vm366 = vcmask 261312
  %367 = vst.msk [vmem:[#allocation3] sm:$0xff] %vm366, %v361
  %368 = vst.msk [vmem:[#allocation3 + $0x8] sm:$0xff] %vm366, %v363
  %v369 = vld [vmem:[#allocation2] sm:$0xff]
  %v370 = vld [vmem:[#allocation2 + $0x8] sm:$0xff]
  %v372 = vsel %vm76, %v369, 0
  %v375 = vsel %vm76, %v370, 0
  %377 = vmatprep.subr.mxu0 0.0
  %378 = vmatpush1.msra.mxu0 0.0
  %379 = vmatprep.subr.mxu0 0.0
  %380 = vmatpush1.msra.mxu0 0.0
  %381 = vmatprep.subr.mxu0 0.0
  %382 = vmatpush1.msra.mxu0 0.0
  %383 = vmatprep.subr.mxu0 0.0
  %384 = vmatpush1.msra.mxu0 0.0
  %385 = vmatprep.subr.mxu0 0.0
  %386 = vmatpush1.msra.mxu0 0.0
  %387 = vmatprep.subr.mxu0 0.0
  %388 = vmatpush1.msra.mxu0 0.0
  %389 = vmatprep.subr.mxu0 0.0
  %390 = vmatpush1.msra.mxu0 0.0
  %391 = vmatprep.subr.mxu0 0.0
  %392 = vmatpush1.msra.mxu0 0.0
  %393 = vmatprep.subr.mxu0 0.0
  %394 = vmatpush1.msra.mxu0 0.0
  %395 = vmatprep.subr.mxu0 0.0
  %396 = vmatpush1.msra.mxu0 0.0
  %397 = vmatprep.subr.mxu0 0.0
  %398 = vmatpush1.msra.mxu0 0.0
  %399 = vmatprep.subr.mxu0 0.0
  %400 = vmatpush1.msra.mxu0 0.0
  %401 = vmatprep.subr.mxu0 0.0
  %402 = vmatpush1.msra.mxu0 0.0
  %403 = vmatprep.subr.mxu0 0.0
  %404 = vmatpush1.msra.mxu0 0.0
  %405 = vmatprep.subr.mxu0 0.0
  %406 = vmatpush1.msra.mxu0 %v357
  %407 = vmatprep.subr.mxu0 0.0
  %408 = vmatpush1.msra.mxu0 %v356
  %409 = vmatprep.subr.mxu0 0.0
  %410 = vmatpush2.msra.mxu0 0.0
  %411 = vmatprep.subr.mxu0 0.0
  %412 = vmatpush2.msra.mxu0 0.0
  %413 = vmatprep.subr.mxu0 0.0
  %414 = vmatpush2.msra.mxu0 0.0
  %415 = vmatprep.subr.mxu0 0.0
  %416 = vmatpush2.msra.mxu0 0.0
  %417 = vmatprep.subr.mxu0 0.0
  %418 = vmatpush2.msra.mxu0 0.0
  %419 = vmatprep.subr.mxu0 0.0
  %420 = vmatpush2.msra.mxu0 0.0
  %421 = vmatprep.subr.mxu0 0.0
  %422 = vmatpush2.msra.mxu0 0.0
  %423 = vmatprep.subr.mxu0 0.0
  %424 = vmatpush2.msra.mxu0 0.0
  %425 = vmatprep.subr.mxu0 0.0
  %426 = vmatpush2.msra.mxu0 0.0
  %427 = vmatprep.subr.mxu0 0.0
  %428 = vmatpush2.msra.mxu0 0.0
  %429 = vmatprep.subr.mxu0 0.0
  %430 = vmatpush2.msra.mxu0 0.0
  %431 = vmatprep.subr.mxu0 0.0
  %432 = vmatpush2.msra.mxu0 0.0
  %433 = vmatprep.subr.mxu0 0.0
  %434 = vmatpush2.msra.mxu0 0.0
  %435 = vmatprep.subr.mxu0 0.0
  %436 = vmatpush2.msra.mxu0 0.0
  %437 = vmatprep.subr.mxu0 0.0
  %438 = vmatpush2.msra.mxu0 0.0
  %439 = vmatprep.subr.mxu0 0.0
  %440 = vmatpush2.msra.mxu0 0.0
  %441 = vmatprep.mubr.f32.mxu0 0.0
  %442 = vmatmul.mubr.f32.gmra.mxu0 %v372
  %v443 = vpop.f32.mrf.mxu0
  %v444 = vadd.f32 0.0, %v443
  %v445 = vpop.f32.mrf.mxu0
  %446 = vmatprep.mubr.f32.mxu0 0.0
  %447 = vmatmul.mubr.f32.gmra.mxu0 %v375
  %v448 = vpop.f32.mrf.mxu0
  %v449 = vadd.f32 0.0, %v448
  %v450 = vpop.f32.mrf.mxu0
  %451 = vdwg.mxu0
  %v452 = vmul.f32 %v444, 2.0
  %v453 = vmul.f32 %v449, 2.0
  %v454 = vsub.f32 %v452, %v258
  %v455 = vsub.f32 %v453, %v259
  %458 = vrot.lane.b32.xlu0 %v454, 32
  %v459 = vpop.permute.xlu0 %458
  %460 = vrot.lane.b32.xlu0 %v455, 32
  %v461 = vpop.permute.xlu0 %460
  %vm464 = vcmask 326912
  %465 = vst.msk [vmem:[#allocation3] sm:$0xff] %vm464, %v459
  %466 = vst.msk [vmem:[#allocation3 + $0x8] sm:$0xff] %vm464, %v461
  %v467 = vld [vmem:[#allocation2] sm:$0xff]
  %v468 = vld [vmem:[#allocation2 + $0x8] sm:$0xff]
  %v470 = vsel %vm76, %v467, 0
  %v473 = vsel %vm76, %v468, 0
  %475 = vmatprep.subr.mxu0 0.0
  %476 = vmatpush1.msra.mxu0 0.0
  %477 = vmatprep.subr.mxu0 0.0
  %478 = vmatpush1.msra.mxu0 0.0
  %479 = vmatprep.subr.mxu0 0.0
  %480 = vmatpush1.msra.mxu0 0.0
  %481 = vmatprep.subr.mxu0 0.0
  %482 = vmatpush1.msra.mxu0 0.0
  %483 = vmatprep.subr.mxu0 0.0
  %484 = vmatpush1.msra.mxu0 0.0
  %485 = vmatprep.subr.mxu0 0.0
  %486 = vmatpush1.msra.mxu0 0.0
  %487 = vmatprep.subr.mxu0 0.0
  %488 = vmatpush1.msra.mxu0 0.0
  %489 = vmatprep.subr.mxu0 0.0
  %490 = vmatpush1.msra.mxu0 0.0
  %491 = vmatprep.subr.mxu0 0.0
  %492 = vmatpush1.msra.mxu0 0.0
  %493 = vmatprep.subr.mxu0 0.0
  %494 = vmatpush1.msra.mxu0 0.0
  %495 = vmatprep.subr.mxu0 0.0
  %496 = vmatpush1.msra.mxu0 0.0
  %497 = vmatprep.subr.mxu0 0.0
  %498 = vmatpush1.msra.mxu0 0.0
  %499 = vmatprep.subr.mxu0 0.0
  %500 = vmatpush1.msra.mxu0 0.0
  %501 = vmatprep.subr.mxu0 0.0
  %502 = vmatpush1.msra.mxu0 0.0
  %503 = vmatprep.subr.mxu0 0.0
  %504 = vmatpush1.msra.mxu0 %v455
  %505 = vmatprep.subr.mxu0 0.0
  %506 = vmatpush1.msra.mxu0 %v454
  %507 = vmatprep.subr.mxu0 0.0
  %508 = vmatpush2.msra.mxu0 0.0
  %509 = vmatprep.subr.mxu0 0.0
  %510 = vmatpush2.msra.mxu0 0.0
  %511 = vmatprep.subr.mxu0 0.0
  %512 = vmatpush2.msra.mxu0 0.0
  %513 = vmatprep.subr.mxu0 0.0
  %514 = vmatpush2.msra.mxu0 0.0
  %515 = vmatprep.subr.mxu0 0.0
  %516 = vmatpush2.msra.mxu0 0.0
  %517 = vmatprep.subr.mxu0 0.0
  %518 = vmatpush2.msra.mxu0 0.0
  %519 = vmatprep.subr.mxu0 0.0
  %520 = vmatpush2.msra.mxu0 0.0
  %521 = vmatprep.subr.mxu0 0.0
  %522 = vmatpush2.msra.mxu0 0.0
  %523 = vmatprep.subr.mxu0 0.0
  %524 = vmatpush2.msra.mxu0 0.0
  %525 = vmatprep.subr.mxu0 0.0
  %526 = vmatpush2.msra.mxu0 0.0
  %527 = vmatprep.subr.mxu0 0.0
  %528 = vmatpush2.msra.mxu0 0.0
  %529 = vmatprep.subr.mxu0 0.0
  %530 = vmatpush2.msra.mxu0 0.0
  %531 = vmatprep.subr.mxu0 0.0
  %532 = vmatpush2.msra.mxu0 0.0
  %533 = vmatprep.subr.mxu0 0.0
  %534 = vmatpush2.msra.mxu0 0.0
  %535 = vmatprep.subr.mxu0 0.0
  %536 = vmatpush2.msra.mxu0 0.0
  %537 = vmatprep.subr.mxu0 0.0
  %538 = vmatpush2.msra.mxu0 0.0
  %539 = vmatprep.mubr.f32.mxu0 0.0
  %540 = vmatmul.mubr.f32.gmra.mxu0 %v470
  %v541 = vpop.f32.mrf.mxu0
  %v542 = vadd.f32 0.0, %v541
  %v543 = vpop.f32.mrf.mxu0
  %544 = vmatprep.mubr.f32.mxu0 0.0
  %545 = vmatmul.mubr.f32.gmra.mxu0 %v473
  %v546 = vpop.f32.mrf.mxu0
  %v547 = vadd.f32 0.0, %v546
  %v548 = vpop.f32.mrf.mxu0
  %549 = vdwg.mxu0
  %v550 = vmul.f32 %v542, 2.0
  %v551 = vmul.f32 %v547, 2.0
  %v552 = vsub.f32 %v550, %v356
  %v553 = vsub.f32 %v551, %v357
  %556 = vrot.lane.b32.xlu0 %v552, 40
  %v557 = vpop.permute.xlu0 %556
  %558 = vrot.lane.b32.xlu0 %v553, 40
  %v559 = vpop.permute.xlu0 %558
  %vm562 = vcmask 392512
  %563 = vst.msk [vmem:[#allocation3] sm:$0xff] %vm562, %v557
  %564 = vst.msk [vmem:[#allocation3 + $0x8] sm:$0xff] %vm562, %v559
  %v565 = vld [vmem:[#allocation2] sm:$0xff]
  %v566 = vld [vmem:[#allocation2 + $0x8] sm:$0xff]
  %v568 = vsel %vm76, %v565, 0
  %v571 = vsel %vm76, %v566, 0
  %573 = vmatprep.subr.mxu0 0.0
  %574 = vmatpush1.msra.mxu0 0.0
  %575 = vmatprep.subr.mxu0 0.0
  %576 = vmatpush1.msra.mxu0 0.0
  %577 = vmatprep.subr.mxu0 0.0
  %578 = vmatpush1.msra.mxu0 0.0
  %579 = vmatprep.subr.mxu0 0.0
  %580 = vmatpush1.msra.mxu0 0.0
  %581 = vmatprep.subr.mxu0 0.0
  %582 = vmatpush1.msra.mxu0 0.0
  %583 = vmatprep.subr.mxu0 0.0
  %584 = vmatpush1.msra.mxu0 0.0
  %585 = vmatprep.subr.mxu0 0.0
  %586 = vmatpush1.msra.mxu0 0.0
  %587 = vmatprep.subr.mxu0 0.0
  %588 = vmatpush1.msra.mxu0 0.0
  %589 = vmatprep.subr.mxu0 0.0
  %590 = vmatpush1.msra.mxu0 0.0
  %591 = vmatprep.subr.mxu0 0.0
  %592 = vmatpush1.msra.mxu0 0.0
  %593 = vmatprep.subr.mxu0 0.0
  %594 = vmatpush1.msra.mxu0 0.0
  %595 = vmatprep.subr.mxu0 0.0
  %596 = vmatpush1.msra.mxu0 0.0
  %597 = vmatprep.subr.mxu0 0.0
  %598 = vmatpush1.msra.mxu0 0.0
  %599 = vmatprep.subr.mxu0 0.0
  %600 = vmatpush1.msra.mxu0 0.0
  %601 = vmatprep.subr.mxu0 0.0
  %602 = vmatpush1.msra.mxu0 %v553
  %603 = vmatprep.subr.mxu0 0.0
  %604 = vmatpush1.msra.mxu0 %v552
  %605 = vmatprep.subr.mxu0 0.0
  %606 = vmatpush2.msra.mxu0 0.0
  %607 = vmatprep.subr.mxu0 0.0
  %608 = vmatpush2.msra.mxu0 0.0
  %609 = vmatprep.subr.mxu0 0.0
  %610 = vmatpush2.msra.mxu0 0.0
  %611 = vmatprep.subr.mxu0 0.0
  %612 = vmatpush2.msra.mxu0 0.0
  %613 = vmatprep.subr.mxu0 0.0
  %614 = vmatpush2.msra.mxu0 0.0
  %615 = vmatprep.subr.mxu0 0.0
  %616 = vmatpush2.msra.mxu0 0.0
  %617 = vmatprep.subr.mxu0 0.0
  %618 = vmatpush2.msra.mxu0 0.0
  %619 = vmatprep.subr.mxu0 0.0
  %620 = vmatpush2.msra.mxu0 0.0
  %621 = vmatprep.subr.mxu0 0.0
  %622 = vmatpush2.msra.mxu0 0.0
  %623 = vmatprep.subr.mxu0 0.0
  %624 = vmatpush2.msra.mxu0 0.0
  %625 = vmatprep.subr.mxu0 0.0
  %626 = vmatpush2.msra.mxu0 0.0
  %627 = vmatprep.subr.mxu0 0.0
  %628 = vmatpush2.msra.mxu0 0.0
  %629 = vmatprep.subr.mxu0 0.0
  %630 = vmatpush2.msra.mxu0 0.0
  %631 = vmatprep.subr.mxu0 0.0
  %632 = vmatpush2.msra.mxu0 0.0
  %633 = vmatprep.subr.mxu0 0.0
  %634 = vmatpush2.msra.mxu0 0.0
  %635 = vmatprep.subr.mxu0 0.0
  %636 = vmatpush2.msra.mxu0 0.0
  %637 = vmatprep.mubr.f32.mxu0 0.0
  %638 = vmatmul.mubr.f32.gmra.mxu0 %v568
  %v639 = vpop.f32.mrf.mxu0
  %v640 = vadd.f32 0.0, %v639
  %v641 = vpop.f32.mrf.mxu0
  %642 = vmatprep.mubr.f32.mxu0 0.0
  %643 = vmatmul.mubr.f32.gmra.mxu0 %v571
  %v644 = vpop.f32.mrf.mxu0
  %v645 = vadd.f32 0.0, %v644
  %v646 = vpop.f32.mrf.mxu0
  %647 = vdwg.mxu0
  %v648 = vmul.f32 %v640, 2.0
  %v649 = vmul.f32 %v645, 2.0
  %v650 = vsub.f32 %v648, %v454
  %v651 = vsub.f32 %v649, %v455
  %654 = vrot.lane.b32.xlu0 %v650, 48
  %v655 = vpop.permute.xlu0 %654
  %656 = vrot.lane.b32.xlu0 %v651, 48
  %v657 = vpop.permute.xlu0 %656
  %vm660 = vcmask 458112
  %661 = vst.msk [vmem:[#allocation3] sm:$0xff] %vm660, %v655
  %662 = vst.msk [vmem:[#allocation3 + $0x8] sm:$0xff] %vm660, %v657
  %v663 = vld [vmem:[#allocation2] sm:$0xff]
  %v664 = vld [vmem:[#allocation2 + $0x8] sm:$0xff]
  %v666 = vsel %vm76, %v663, 0
  %v669 = vsel %vm76, %v664, 0
  %671 = vmatprep.subr.mxu0 0.0
  %672 = vmatpush1.msra.mxu0 0.0
  %673 = vmatprep.subr.mxu0 0.0
  %674 = vmatpush1.msra.mxu0 0.0
  %675 = vmatprep.subr.mxu0 0.0
  %676 = vmatpush1.msra.mxu0 0.0
  %677 = vmatprep.subr.mxu0 0.0
  %678 = vmatpush1.msra.mxu0 0.0
  %679 = vmatprep.subr.mxu0 0.0
  %680 = vmatpush1.msra.mxu0 0.0
  %681 = vmatprep.subr.mxu0 0.0
  %682 = vmatpush1.msra.mxu0 0.0
  %683 = vmatprep.subr.mxu0 0.0
  %684 = vmatpush1.msra.mxu0 0.0
  %685 = vmatprep.subr.mxu0 0.0
  %686 = vmatpush1.msra.mxu0 0.0
  %687 = vmatprep.subr.mxu0 0.0
  %688 = vmatpush1.msra.mxu0 0.0
  %689 = vmatprep.subr.mxu0 0.0
  %690 = vmatpush1.msra.mxu0 0.0
  %691 = vmatprep.subr.mxu0 0.0
  %692 = vmatpush1.msra.mxu0 0.0
  %693 = vmatprep.subr.mxu0 0.0
  %694 = vmatpush1.msra.mxu0 0.0
  %695 = vmatprep.subr.mxu0 0.0
  %696 = vmatpush1.msra.mxu0 0.0
  %697 = vmatprep.subr.mxu0 0.0
  %698 = vmatpush1.msra.mxu0 0.0
  %699 = vmatprep.subr.mxu0 0.0
  %700 = vmatpush1.msra.mxu0 %v651
  %701 = vmatprep.subr.mxu0 0.0
  %702 = vmatpush1.msra.mxu0 %v650
  %703 = vmatprep.subr.mxu0 0.0
  %704 = vmatpush2.msra.mxu0 0.0
  %705 = vmatprep.subr.mxu0 0.0
  %706 = vmatpush2.msra.mxu0 0.0
  %707 = vmatprep.subr.mxu0 0.0
  %708 = vmatpush2.msra.mxu0 0.0
  %709 = vmatprep.subr.mxu0 0.0
  %710 = vmatpush2.msra.mxu0 0.0
  %711 = vmatprep.subr.mxu0 0.0
  %712 = vmatpush2.msra.mxu0 0.0
  %713 = vmatprep.subr.mxu0 0.0
  %714 = vmatpush2.msra.mxu0 0.0
  %715 = vmatprep.subr.mxu0 0.0
  %716 = vmatpush2.msra.mxu0 0.0
  %717 = vmatprep.subr.mxu0 0.0
  %718 = vmatpush2.msra.mxu0 0.0
  %719 = vmatprep.subr.mxu0 0.0
  %720 = vmatpush2.msra.mxu0 0.0
  %721 = vmatprep.subr.mxu0 0.0
  %722 = vmatpush2.msra.mxu0 0.0
  %723 = vmatprep.subr.mxu0 0.0
  %724 = vmatpush2.msra.mxu0 0.0
  %725 = vmatprep.subr.mxu0 0.0
  %726 = vmatpush2.msra.mxu0 0.0
  %727 = vmatprep.subr.mxu0 0.0
  %728 = vmatpush2.msra.mxu0 0.0
  %729 = vmatprep.subr.mxu0 0.0
  %730 = vmatpush2.msra.mxu0 0.0
  %731 = vmatprep.subr.mxu0 0.0
  %732 = vmatpush2.msra.mxu0 0.0
  %733 = vmatprep.subr.mxu0 0.0
  %734 = vmatpush2.msra.mxu0 0.0
  %735 = vmatprep.mubr.f32.mxu0 0.0
  %736 = vmatmul.mubr.f32.gmra.mxu0 %v666
  %v737 = vpop.f32.mrf.mxu0
  %v738 = vadd.f32 0.0, %v737
  %v739 = vpop.f32.mrf.mxu0
  %740 = vmatprep.mubr.f32.mxu0 0.0
  %741 = vmatmul.mubr.f32.gmra.mxu0 %v669
  %v742 = vpop.f32.mrf.mxu0
  %v743 = vadd.f32 0.0, %v742
  %v744 = vpop.f32.mrf.mxu0
  %745 = vdwg.mxu0
  %v746 = vmul.f32 %v738, 2.0
  %v747 = vmul.f32 %v743, 2.0
  %v748 = vsub.f32 %v746, %v552
  %v749 = vsub.f32 %v747, %v553
  %752 = vrot.lane.b32.xlu0 %v748, 56
  %v753 = vpop.permute.xlu0 %752
  %754 = vrot.lane.b32.xlu0 %v749, 56
  %v755 = vpop.permute.xlu0 %754
  %vm758 = vcmask 523712
  %759 = vst.msk [vmem:[#allocation3] sm:$0xff] %vm758, %v753
  %760 = vst.msk [vmem:[#allocation3 + $0x8] sm:$0xff] %vm758, %v755
  %v761 = vld [vmem:[#allocation3] sm:$0xff]
  %v762 = vld [vmem:[#allocation3 + $0x8] sm:$0xff]
  %v763 = vld [vmem:[%s2] sm:$0xff]
  %v764 = vld [vmem:[%s2 + $0x8] sm:$0xff]
  %v765 = vld [vmem:[%s2 + $0x10] sm:$0xff]
  %v766 = vld [vmem:[%s2 + $0x18] sm:$0xff]
  %v767 = vld [vmem:[%s2 + $0x20] sm:$0xff]
  %v768 = vld [vmem:[%s2 + $0x28] sm:$0xff]
  %v769 = vld [vmem:[%s2 + $0x30] sm:$0xff]
  %v770 = vld [vmem:[%s2 + $0x38] sm:$0xff]
  %v771 = vld [vmem:[%s3] sm:$0x1]
  %v773 = vlaneseq
  %v774 = vshrl.u32 %v773, 7
  %v775 = vsub.s32 0, %v774
  %v776 = vrot.slane %v771, %v775
  %vm778 = vcmask 523264
  %v780 = vsel %vm778, %v761, 0
  %v783 = vsel %vm778, %v762, 0
  %785 = vmatprep.subr.mxu0 0.0
  %786 = vmatpush1.msra.mxu0 0.0
  %787 = vmatprep.subr.mxu0 0.0
  %788 = vmatpush1.msra.mxu0 0.0
  %789 = vmatprep.subr.mxu0 0.0
  %790 = vmatpush1.msra.mxu0 0.0
  %791 = vmatprep.subr.mxu0 0.0
  %792 = vmatpush1.msra.mxu0 0.0
  %793 = vmatprep.subr.mxu0 0.0
  %794 = vmatpush1.msra.mxu0 0.0
  %795 = vmatprep.subr.mxu0 0.0
  %796 = vmatpush1.msra.mxu0 0.0
  %797 = vmatprep.subr.mxu0 0.0
  %798 = vmatpush1.msra.mxu0 0.0
  %799 = vmatprep.subr.mxu0 0.0
  %800 = vmatpush1.msra.mxu0 0.0
  %801 = vmatprep.subr.mxu0 0.0
  %802 = vmatpush1.msra.mxu0 %v770
  %803 = vmatprep.subr.mxu0 0.0
  %804 = vmatpush1.msra.mxu0 %v769
  %805 = vmatprep.subr.mxu0 0.0
  %806 = vmatpush1.msra.mxu0 %v768
  %807 = vmatprep.subr.mxu0 0.0
  %808 = vmatpush1.msra.mxu0 %v767
  %809 = vmatprep.subr.mxu0 0.0
  %810 = vmatpush1.msra.mxu0 %v766
  %811 = vmatprep.subr.mxu0 0.0
  %812 = vmatpush1.msra.mxu0 %v765
  %813 = vmatprep.subr.mxu0 0.0
  %814 = vmatpush1.msra.mxu0 %v764
  %815 = vmatprep.subr.mxu0 0.0
  %816 = vmatpush1.msra.mxu0 %v763
  %817 = vmatprep.subr.mxu0 0.0
  %818 = vmatpush2.msra.mxu0 0.0
  %819 = vmatprep.subr.mxu0 0.0
  %820 = vmatpush2.msra.mxu0 0.0
  %821 = vmatprep.subr.mxu0 0.0
  %822 = vmatpush2.msra.mxu0 0.0
  %823 = vmatprep.subr.mxu0 0.0
  %824 = vmatpush2.msra.mxu0 0.0
  %825 = vmatprep.subr.mxu0 0.0
  %826 = vmatpush2.msra.mxu0 0.0
  %827 = vmatprep.subr.mxu0 0.0
  %828 = vmatpush2.msra.mxu0 0.0
  %829 = vmatprep.subr.mxu0 0.0
  %830 = vmatpush2.msra.mxu0 0.0
  %831 = vmatprep.subr.mxu0 0.0
  %832 = vmatpush2.msra.mxu0 0.0
  %833 = vmatprep.subr.mxu0 0.0
  %834 = vmatpush2.msra.mxu0 0.0
  %835 = vmatprep.subr.mxu0 0.0
  %836 = vmatpush2.msra.mxu0 0.0
  %837 = vmatprep.subr.mxu0 0.0
  %838 = vmatpush2.msra.mxu0 0.0
  %839 = vmatprep.subr.mxu0 0.0
  %840 = vmatpush2.msra.mxu0 0.0
  %841 = vmatprep.subr.mxu0 0.0
  %842 = vmatpush2.msra.mxu0 0.0
  %843 = vmatprep.subr.mxu0 0.0
  %844 = vmatpush2.msra.mxu0 0.0
  %845 = vmatprep.subr.mxu0 0.0
  %846 = vmatpush2.msra.mxu0 0.0
  %847 = vmatprep.subr.mxu0 0.0
  %848 = vmatpush2.msra.mxu0 0.0
  %849 = vmatprep.mubr.f32.mxu0 0.0
  %850 = vmatmul.mubr.f32.gmra.mxu0 %v780
  %v851 = vpop.f32.mrf.mxu0
  %v852 = vadd.f32 %v776, %v851
  %v853 = vpop.f32.mrf.mxu0
  %854 = vmatprep.mubr.f32.mxu0 0.0
  %855 = vmatmul.mubr.f32.gmra.mxu0 %v783
  %v856 = vpop.f32.mrf.mxu0
  %v857 = vadd.f32 %v776, %v856
  %v858 = vpop.f32.mrf.mxu0
  %859 = vdwg.mxu0
  %v860 = vmax.f32 %v852, 0.0
  %v861 = vmax.f32 %v857, 0.0
  %v862 = vld [vmem:[%s4] sm:$0xff]
  %v863 = vld [vmem:[%s4 + $0x8] sm:$0xff]
  %v864 = vld [vmem:[%s4 + $0x10] sm:$0xff]
  %v865 = vld [vmem:[%s4 + $0x18] sm:$0xff]
  %v866 = vld [vmem:[%s4 + $0x20] sm:$0xff]
  %v867 = vld [vmem:[%s4 + $0x28] sm:$0xff]
  %v868 = vld [vmem:[%s4 + $0x30] sm:$0xff]
  %v869 = vld [vmem:[%s4 + $0x38] sm:$0xff]
  %v870 = vld [vmem:[%s4 + $0x40] sm:$0xff]
  %v871 = vld [vmem:[%s4 + $0x48] sm:$0xff]
  %v872 = vld [vmem:[%s4 + $0x50] sm:$0xff]
  %v873 = vld [vmem:[%s4 + $0x58] sm:$0xff]
  %v874 = vld [vmem:[%s4 + $0x60] sm:$0xff]
  %v875 = vld [vmem:[%s4 + $0x68] sm:$0xff]
  %v876 = vld [vmem:[%s4 + $0x70] sm:$0xff]
  %v877 = vld [vmem:[%s4 + $0x78] sm:$0xff]
  %v878 = vld [vmem:[%s4 + $0x80] sm:$0xff]
  %v879 = vld [vmem:[%s4 + $0x88] sm:$0xff]
  %v880 = vld [vmem:[%s4 + $0x90] sm:$0xff]
  %v881 = vld [vmem:[%s4 + $0x98] sm:$0xff]
  %v882 = vld [vmem:[%s4 + $0xa0] sm:$0xff]
  %v883 = vld [vmem:[%s4 + $0xa8] sm:$0xff]
  %v884 = vld [vmem:[%s4 + $0xb0] sm:$0xff]
  %v885 = vld [vmem:[%s4 + $0xb8] sm:$0xff]
  %v886 = vld [vmem:[%s4 + $0xc0] sm:$0xff]
  %v887 = vld [vmem:[%s4 + $0xc8] sm:$0xff]
  %v888 = vld [vmem:[%s4 + $0xd0] sm:$0xff]
  %v889 = vld [vmem:[%s4 + $0xd8] sm:$0xff]
  %v890 = vld [vmem:[%s4 + $0xe0] sm:$0xff]
  %v891 = vld [vmem:[%s4 + $0xe8] sm:$0xff]
  %v892 = vld [vmem:[%s4 + $0xf0] sm:$0xff]
  %v893 = vld [vmem:[%s4 + $0xf8] sm:$0xff]
  %894 = vmatprep.subr.mxu0 %v893
  %895 = vmatpush1.msra.mxu0 %v892
  %896 = vmatprep.subr.mxu0 %v891
  %897 = vmatpush1.msra.mxu0 %v890
  %898 = vmatprep.subr.mxu0 %v889
  %899 = vmatpush1.msra.mxu0 %v888
  %900 = vmatprep.subr.mxu0 %v887
  %901 = vmatpush1.msra.mxu0 %v886
  %902 = vmatprep.subr.mxu0 %v885
  %903 = vmatpush1.msra.mxu0 %v884
  %904 = vmatprep.subr.mxu0 %v883
  %905 = vmatpush1.msra.mxu0 %v882
  %906 = vmatprep.subr.mxu0 %v881
  %907 = vmatpush1.msra.mxu0 %v880
  %908 = vmatprep.subr.mxu0 %v879
  %909 = vmatpush1.msra.mxu0 %v878
  %910 = vmatprep.subr.mxu0 %v877
  %911 = vmatpush1.msra.mxu0 %v876
  %912 = vmatprep.subr.mxu0 %v875
  %913 = vmatpush1.msra.mxu0 %v874
  %914 = vmatprep.subr.mxu0 %v873
  %915 = vmatpush1.msra.mxu0 %v872
  %916 = vmatprep.subr.mxu0 %v871
  %917 = vmatpush1.msra.mxu0 %v870
  %918 = vmatprep.subr.mxu0 %v869
  %919 = vmatpush1.msra.mxu0 %v868
  %920 = vmatprep.subr.mxu0 %v867
  %921 = vmatpush1.msra.mxu0 %v866
  %922 = vmatprep.subr.mxu0 %v865
  %923 = vmatpush1.msra.mxu0 %v864
  %924 = vmatprep.subr.mxu0 %v863
  %925 = vmatpush1.msra.mxu0 %v862
  %926 = vmatprep.subr.mxu0 0.0
  %927 = vmatpush2.msra.mxu0 0.0
  %928 = vmatprep.subr.mxu0 0.0
  %929 = vmatpush2.msra.mxu0 0.0
  %930 = vmatprep.subr.mxu0 0.0
  %931 = vmatpush2.msra.mxu0 0.0
  %932 = vmatprep.subr.mxu0 0.0
  %933 = vmatpush2.msra.mxu0 0.0
  %934 = vmatprep.subr.mxu0 0.0
  %935 = vmatpush2.msra.mxu0 0.0
  %936 = vmatprep.subr.mxu0 0.0
  %937 = vmatpush2.msra.mxu0 0.0
  %938 = vmatprep.subr.mxu0 0.0
  %939 = vmatpush2.msra.mxu0 0.0
  %940 = vmatprep.subr.mxu0 0.0
  %941 = vmatpush2.msra.mxu0 0.0
  %942 = vmatprep.subr.mxu0 0.0
  %943 = vmatpush2.msra.mxu0 0.0
  %944 = vmatprep.subr.mxu0 0.0
  %945 = vmatpush2.msra.mxu0 0.0
  %946 = vmatprep.subr.mxu0 0.0
  %947 = vmatpush2.msra.mxu0 0.0
  %948 = vmatprep.subr.mxu0 0.0
  %949 = vmatpush2.msra.mxu0 0.0
  %950 = vmatprep.subr.mxu0 0.0
  %951 = vmatpush2.msra.mxu0 0.0
  %952 = vmatprep.subr.mxu0 0.0
  %953 = vmatpush2.msra.mxu0 0.0
  %954 = vmatprep.subr.mxu0 0.0
  %955 = vmatpush2.msra.mxu0 0.0
  %956 = vmatprep.subr.mxu0 0.0
  %957 = vmatpush2.msra.mxu0 0.0
  %958 = vmatprep.mubr.f32.mxu0 0.0
  %959 = vmatmul.mubr.f32.gmra.mxu0 %v860
  %v960 = vpop.f32.mrf.mxu0
  %v961 = vadd.f32 0.0, %v960
  %v962 = vpop.f32.mrf.mxu0
  %v963 = vadd.f32 0.0, %v962
  %964 = vmatprep.mubr.f32.mxu0 0.0
  %965 = vmatmul.mubr.f32.gmra.mxu0 %v861
  %v966 = vpop.f32.mrf.mxu0
  %v967 = vadd.f32 0.0, %v966
  %v968 = vpop.f32.mrf.mxu0
  %v969 = vadd.f32 0.0, %v968
  %970 = vdwg.mxu0
  %v971 = vld [vmem:[#allocation2] sm:$0xff]
  %v972 = vld [vmem:[#allocation2 + $0x8] sm:$0xff]
  %v974 = vsel %vm76, %v971, 0
  %v977 = vsel %vm76, %v972, 0
  %979 = vmatprep.subr.mxu0 0.0
  %980 = vmatpush1.msra.mxu0 0.0
  %981 = vmatprep.subr.mxu0 0.0
  %982 = vmatpush1.msra.mxu0 0.0
  %983 = vmatprep.subr.mxu0 0.0
  %984 = vmatpush1.msra.mxu0 0.0
  %985 = vmatprep.subr.mxu0 0.0
  %986 = vmatpush1.msra.mxu0 0.0
  %987 = vmatprep.subr.mxu0 0.0
  %988 = vmatpush1.msra.mxu0 0.0
  %989 = vmatprep.subr.mxu0 0.0
  %990 = vmatpush1.msra.mxu0 0.0
  %991 = vmatprep.subr.mxu0 0.0
  %992 = vmatpush1.msra.mxu0 0.0
  %993 = vmatprep.subr.mxu0 0.0
  %994 = vmatpush1.msra.mxu0 0.0
  %995 = vmatprep.subr.mxu0 0.0
  %996 = vmatpush1.msra.mxu0 0.0
  %997 = vmatprep.subr.mxu0 0.0
  %998 = vmatpush1.msra.mxu0 0.0
  %999 = vmatprep.subr.mxu0 0.0
  %1000 = vmatpush1.msra.mxu0 0.0
  %1001 = vmatprep.subr.mxu0 0.0
  %1002 = vmatpush1.msra.mxu0 0.0
  %1003 = vmatprep.subr.mxu0 0.0
  %1004 = vmatpush1.msra.mxu0 0.0
  %1005 = vmatprep.subr.mxu0 0.0
  %1006 = vmatpush1.msra.mxu0 0.0
  %1007 = vmatprep.subr.mxu0 0.0
  %1008 = vmatpush1.msra.mxu0 %v969
  %1009 = vmatprep.subr.mxu0 0.0
  %1010 = vmatpush1.msra.mxu0 %v963
  %1011 = vmatprep.subr.mxu0 0.0
  %1012 = vmatpush2.msra.mxu0 0.0
  %1013 = vmatprep.subr.mxu0 0.0
  %1014 = vmatpush2.msra.mxu0 0.0
  %1015 = vmatprep.subr.mxu0 0.0
  %1016 = vmatpush2.msra.mxu0 0.0
  %1017 = vmatprep.subr.mxu0 0.0
  %1018 = vmatpush2.msra.mxu0 0.0
  %1019 = vmatprep.subr.mxu0 0.0
  %1020 = vmatpush2.msra.mxu0 0.0
  %1021 = vmatprep.subr.mxu0 0.0
  %1022 = vmatpush2.msra.mxu0 0.0
  %1023 = vmatprep.subr.mxu0 0.0
  %1024 = vmatpush2.msra.mxu0 0.0
  %1025 = vmatprep.subr.mxu0 0.0
  %1026 = vmatpush2.msra.mxu0 0.0
  %1027 = vmatprep.subr.mxu0 0.0
  %1028 = vmatpush2.msra.mxu0 0.0
  %1029 = vmatprep.subr.mxu0 0.0
  %1030 = vmatpush2.msra.mxu0 0.0
  %1031 = vmatprep.subr.mxu0 0.0
  %1032 = vmatpush2.msra.mxu0 0.0
  %1033 = vmatprep.subr.mxu0 0.0
  %1034 = vmatpush2.msra.mxu0 0.0
  %1035 = vmatprep.subr.mxu0 0.0
  %1036 = vmatpush2.msra.mxu0 0.0
  %1037 = vmatprep.subr.mxu0 0.0
  %1038 = vmatpush2.msra.mxu0 0.0
  %1039 = vmatprep.subr.mxu0 0.0
  %1040 = vmatpush2.msra.mxu0 0.0
  %1041 = vmatprep.subr.mxu0 0.0
  %1042 = vmatpush2.msra.mxu0 0.0
  %1043 = vmatprep.mubr.f32.mxu0 0.0
  %1044 = vmatmul.mubr.f32.gmra.mxu0 %v974
  %v1045 = vpop.f32.mrf.mxu0
  %v1046 = vadd.f32 0.0, %v1045
  %v1047 = vpop.f32.mrf.mxu0
  %1048 = vmatprep.mubr.f32.mxu0 0.0
  %1049 = vmatmul.mubr.f32.gmra.mxu0 %v977
  %v1050 = vpop.f32.mrf.mxu0
  %v1051 = vadd.f32 0.0, %v1050
  %v1052 = vpop.f32.mrf.mxu0
  %1053 = vdwg.mxu0
  %v1054 = vadd.f32 %v961, %v1046
  %v1055 = vadd.f32 %v967, %v1051
  %v1056 = vld [vmem:[%s5] sm:$0x1]
  %v1058 = vlaneseq
  %v1059 = vshrl.u32 %v1058, 7
  %v1060 = vsub.s32 0, %v1059
  %v1061 = vrot.slane %v1056, %v1060
  %v1063 = vadd.f32 %v1054, %v1061
  %v1064 = vadd.f32 %v1055, %v1061
  %1065 = vst [vmem:[%s6] sm:$0xff] %v1063
  %1066 = vst [vmem:[%s6 + $0x8] sm:$0xff] %v1064
  // Predicated region
  $region56: #{kipfnet_forward.1} parent=0 // pred_check
    _
  $region57: #{kipfnet_forward.1} parent=0 // pred_check_branch
    %1068 = sbr.rel (0) target = $region59
  $region58: #{kipfnet_forward.1} parent=0 // pred_region
    _
  $region59: #{kipfnet_forward.1} parent=0 // pred_fallthru
    _
  // Predicated region
  $region60: #{kipfnet_forward.1} parent=0 // pred_check
    _
  $region61: #{kipfnet_forward.1} parent=0 // pred_check_branch
    %1070 = sbr.rel (0) target = $region63
  $region62: #{kipfnet_forward.1} parent=0 // pred_region
    _
  $region63: #{kipfnet_forward.1} parent=0 // pred_fallthru
    _
  %1071 = vsyncmov [#allocation5]
  %s1072 = vpop.sfrf %1071
  %p1073 = scmp.eq.s32.totalorder %s1072, 0
  %p1074 = pneg %p1073
  %1076 = shalt.err (%p1074)
  %s1077 = scalar_lea.sflag [#allocation5], 1
  %1078 = vsyncmov %s1077
  %s1079 = vpop.sfrf %1078
  %p1080 = scmp.eq.s32.totalorder %s1079, 0
  %p1081 = pneg %p1080
  %1083 = shalt.err (%p1081)

</llo_original>
